<compile_context>
chip_gen: v7x
topology: tpu7x:2x2x1
jax: 0.10.0
libtpu: 0.0.40
codegen_flags: <defaults>
</compile_context>

<pallas_src>
import jax
import jax.numpy as jnp
from jax.experimental import pallas as pl
from jax.experimental.pallas import tpu as pltpu

LANES = 128
SUBLANES = 8


def polynet_kernel(w_ref, x_ref, o_ref):
    # w_ref: (4,) f32 in SMEM -> [w_x3, w_x2, w_x1, w_const]
    # x_ref / o_ref: (tile_rows, 128) VMEM tiles (lane-dense)
    x = x_ref[...]
    w0 = w_ref[0]
    w1 = w_ref[1]
    w2 = w_ref[2]
    w3 = w_ref[3]
    # Horner's rule: w0*x^3 + w1*x^2 + w2*x + w3, all on the VPU (f32 compute).
    o_ref[...] = (((w0 * x + w1) * x + w2) * x + w3).astype(o_ref.dtype)


def _default_tile_rows():
    # Generation-aware tile size. 2048 rows = 1 MiB/block (4 MiB with in+out
    # double buffering) fits every generation's default scoped VMEM; on v7x
    # (faster HBM -> per-step overhead dominates) go larger.
    try:
        kind = jax.devices()[0].device_kind.lower()
    except Exception:
        kind = ""
    if "v7" in kind:
        return 4096   # 2 MiB/block, 8 MiB total double-buffered — well < 32 MiB
    return 2048


def polynet_forward(x, coef_w, *, tile_rows=None, out_dtype=jnp.float32,
                    return_padded=False, force_pallas=False):
    """PolyNet.forward.

    x: (N, 1) f32, coef_w: (1, 4) f32 (torch Linear(4,1,bias=False) weight).
    Returns (N, 1) array of dtype `out_dtype`, or the padded lane-dense
    (rows_padded, 128) array if return_padded=True (valid length = N).
    """
    N = x.shape[0]
    w = coef_w.reshape(4).astype(jnp.float32)

    # Small-N fast path: pad/slice/launch overhead dominates below ~1e5 elems;
    # XLA's fused elementwise Horner is strictly faster there.
    if not force_pallas and N < (1 << 17):
        xf = x.reshape(-1).astype(jnp.float32)
        out = (((w[0] * xf + w[1]) * xf + w[2]) * xf + w[3]).astype(out_dtype)
        return out.reshape(N, 1)

    if tile_rows is None:
        tile_rows = _default_tile_rows()

    # Lane-dense reshape: (N,) -> (rows_padded, 128), rows_padded a multiple of
    # the tile row count (itself a multiple of 8 sublanes).
    rows = pl.cdiv(N, LANES)
    rows8 = ((rows + SUBLANES - 1) // SUBLANES) * SUBLANES
    tr = max(SUBLANES, (min(tile_rows, rows8) // SUBLANES) * SUBLANES)
    # Keep >= 2 grid steps when possible so v7x's second TensorCore has work.
    if rows8 <= tr and rows8 >= 2 * SUBLANES:
        half = (rows8 // 2 + SUBLANES - 1) // SUBLANES * SUBLANES
        tr = max(SUBLANES, half)
    rows_padded = ((rows8 + tr - 1) // tr) * tr
    pad = rows_padded * LANES - N

    # The pad/reshape producer is eligible for input fusion into the
    # pallas_call (allow_input_fusion below) so it need not materialize a
    # second HBM copy of x.
    xp = jnp.pad(x.reshape(-1).astype(jnp.float32), (0, pad)).reshape(
        rows_padded, LANES)

    grid = (rows_padded // tr,)
    n_elem = rows_padded * LANES
    out_bytes = n_elem * jnp.dtype(out_dtype).itemsize

    out = pl.pallas_call(
        polynet_kernel,
        out_shape=jax.ShapeDtypeStruct((rows_padded, LANES), out_dtype),
        grid=grid,
        in_specs=[
            # 4 polynomial coefficients: whole array in SMEM, read as scalars.
            pl.BlockSpec(memory_space=pltpu.MemorySpace.SMEM),
            # Streamed, double-buffered lane-dense input tiles.
            pl.BlockSpec((tr, LANES), lambda i: (i, 0)),
        ],
        out_specs=pl.BlockSpec((tr, LANES), lambda i: (i, 0)),
        compiler_params=pltpu.CompilerParams(
            dimension_semantics=("parallel",),
            allow_input_fusion=[False, True]),
        cost_estimate=pl.CostEstimate(
            flops=6 * n_elem, transcendentals=0,
            bytes_accessed=4 * n_elem + out_bytes),
    )(w, xp)

    if return_padded:
        # Lane-dense padded layout; caller slices at the final sink.
        return out
    # Drop padded elements, restore (N, 1).
    return out.reshape(-1)[:N].reshape(N, 1)


if __name__ == "__main__":
    key = jax.random.PRNGKey(0)

    # Toy-regression style inputs: 30 + 20 + 50 = 100 scalar points, shape (N, 1).
    x = jnp.concatenate([
        jnp.linspace(-7.0, -5.0, 30, dtype=jnp.float32),
        jnp.linspace(-2.0, 2.0, 20, dtype=jnp.float32),
        jnp.linspace(4.0, 8.0, 50, dtype=jnp.float32),
    ]).reshape(-1, 1)
    N = x.shape[0]

    # PolyNet.__init__: all params uniform(-0.05, 0.05); coef_ is Linear(4, 1,
    # bias=False) with torch weight shape (1, 4).
    coef_w = jax.random.uniform(key, (1, 4), jnp.float32,
                                minval=-0.05, maxval=0.05)

    # Force the Pallas path (the demo N is below the small-N fast-path cutoff).
    out = polynet_forward(x, coef_w, force_pallas=True)
    out = jax.block_until_ready(out)

    # Pure-JAX reference of the original forward pass (feature matmul form).
    feat_ref = jnp.concatenate([x ** 3, x ** 2, x, jnp.ones_like(x)], axis=1)
    ref = feat_ref @ coef_w.T
    assert out.shape == (N, 1)
    assert jnp.allclose(out, ref, atol=1e-4, rtol=1e-5), (
        f"max abs err {jnp.max(jnp.abs(out - ref))}")

    # Also exercise the small-N fast path for parity.
    out_fast = jax.block_until_ready(polynet_forward(x, coef_w))
    assert jnp.allclose(out_fast, ref, atol=1e-4, rtol=1e-5)

    print("KERNEL_OK")
</pallas_src>

<mosaic_0001>
module attributes {stable_mosaic.version = 11 : i64} {
  func.func @polynet_kernel(%arg0: i32, %arg1: memref<4xf32, #tpu.memory_space<smem>>, %arg2: memref<8x128xf32, #tpu.memory_space<vmem>>, %arg3: memref<8x128xf32, #tpu.memory_space<vmem>>) attributes {dimension_semantics = [#tpu.dimension_semantics<parallel>], iteration_bounds = array<i64: 1>, scalar_prefetch = 0 : i64, scratch_operands = 0 : i64, tpu.core_type = #tpu.core_type<tc>, window_params = [{transform_indices = @transform_0, window_bounds = array<i64: 4>}, {transform_indices = @transform_1, window_bounds = array<i64: 8, 128>}, {transform_indices = @transform_2, window_bounds = array<i64: 8, 128>}]} {
    %c0 = arith.constant 0 : index
    %c0_0 = arith.constant 0 : index
    %0 = vector.load %arg2[%c0, %c0_0] : memref<8x128xf32, #tpu.memory_space<vmem>>, vector<8x128xf32>
    %c0_1 = arith.constant 0 : index
    %1 = memref.load %arg1[%c0_1] : memref<4xf32, #tpu.memory_space<smem>>
    %c1 = arith.constant 1 : index
    %2 = memref.load %arg1[%c1] : memref<4xf32, #tpu.memory_space<smem>>
    %c2 = arith.constant 2 : index
    %3 = memref.load %arg1[%c2] : memref<4xf32, #tpu.memory_space<smem>>
    %c3 = arith.constant 3 : index
    %4 = memref.load %arg1[%c3] : memref<4xf32, #tpu.memory_space<smem>>
    %5 = vector.broadcast %1 : f32 to vector<8x128xf32>
    %6 = arith.mulf %5, %0 : vector<8x128xf32>
    %7 = vector.broadcast %2 : f32 to vector<8x128xf32>
    %8 = arith.addf %6, %7 : vector<8x128xf32>
    %9 = arith.mulf %8, %0 : vector<8x128xf32>
    %10 = vector.broadcast %3 : f32 to vector<8x128xf32>
    %11 = arith.addf %9, %10 : vector<8x128xf32>
    %12 = arith.mulf %11, %0 : vector<8x128xf32>
    %13 = vector.broadcast %4 : f32 to vector<8x128xf32>
    %14 = arith.addf %12, %13 : vector<8x128xf32>
    %c0_2 = arith.constant 0 : index
    %c0_3 = arith.constant 0 : index
    %15 = vector.load %arg3[%c0_2, %c0_3] : memref<8x128xf32, #tpu.memory_space<vmem>>, vector<8x128xf32>
    tpu.vector_store %arg3[%c0_2, %c0_3], %14 {strides = array<i32>} : memref<8x128xf32, #tpu.memory_space<vmem>>, vector<8x128xf32>,
    return
  }
  func.func @transform_0(%arg0: i32) -> i32 {
    %c0_i32 = arith.constant 0 : i32
    %c0_i32_0 = arith.constant 0 : i32
    return %c0_i32 : i32
  }
  func.func @transform_1(%arg0: i32) -> (i32, i32) {
    %c0_i32 = arith.constant 0 : i32
    %c0_i32_0 = arith.constant 0 : i32
    return %arg0, %c0_i32 : i32, i32
  }
  func.func @transform_2(%arg0: i32) -> (i32, i32) {
    %c0_i32 = arith.constant 0 : i32
    %c0_i32_0 = arith.constant 0 : i32
    return %arg0, %c0_i32 : i32, i32
  }
}

</mosaic_0001>

<llo_original>
// kernel: tpu_custom_call.1
$region0: #{tpu_custom_call.1}
  #allocation0 [shape = 'u32[]', space=smem, size = 0x4, offset = 0x4, fixed_abs, tag = 'smem constant byte address 0x4 - core index']
  #allocation1 [shape = 'u32[144,128]{1,0:T(1,128)}', space=vmem, size = 0x12000, scoped, tag = 'internal scratch']
  %s0 = inlined_call_operand.hbm [shape: f32[4], index: 0, kind: input, shape index: {}]
  %s1 = inlined_call_operand.hbm [shape: f32[8,128], index: 1, kind: input, shape index: {}]
  %s2 = inlined_call_operand.hbm [shape: f32[8,128], index: 2, kind: output, shape index: {}]
  %s3 = sld [smem:[#allocation0]]
  $region26: #{tpu_custom_call.1} parent=0
    _
  %s5 = ssub.s32 1, %s3
  %s6 = scalar_select 0, %s5, %s3
  $region1: #{tpu_custom_call.1} parent=0
    #allocation2 [shape = 'u8[512]{0}', space=smem, size = 0x200, scoped, tag = 'input window, operand 0, single buffered']
    #allocation3 [shape = 's32[1]{0}', space=sflag, size = 0x4, scoped, tag = 'scoped memory for tpu_custom_call.1']
    #allocation4 [shape = 's32[1]{0}', space=sflag, size = 0x4, scoped, tag = 'scoped memory for tpu_custom_call.1']
    #allocation5 [shape = 's32[1]{0}', space=sflag, size = 0x4, scoped, tag = 'scoped memory for tpu_custom_call.1']
    #allocation6 [shape = 'u8[4096]{0}', space=vmem, size = 0x1000, scoped, tag = 'input window, operand 1, single buffered']
    #allocation7 [shape = 'u8[4096]{0}', space=vmem, size = 0x1000, scoped, tag = 'output window, operand 0, single buffered']
    %7 = vsyncpa [#allocation5], 0
    %8 = vsyncpa [#allocation3], 0
    %9 = vsyncpa [#allocation4], 0
    // Predicated region
    $region2: #{tpu_custom_call.1} parent=1 // pred_check
      _
    $region3: #{tpu_custom_call.1} parent=1 // pred_check_branch
      %11 = sbr.rel (0) target = $region5
    $region4: #{tpu_custom_call.1} parent=1 // pred_region
      %s13 = ssub.s32 16, 16
      %14 = vsyncadd [#allocation5], %s13
      %17 = dma.hbm_to_smem %s0, 16, [#allocation2], [#allocation5]
    $region5: #{tpu_custom_call.1} parent=1 // pred_fallthru
      _
    // Predicated region
    $region6: #{tpu_custom_call.1} parent=1 // pred_check
      _
    $region7: #{tpu_custom_call.1} parent=1 // pred_check_branch
      %19 = sbr.rel (0) target = $region9
    $region8: #{tpu_custom_call.1} parent=1 // pred_region
      %s21 = ssub.s32 128, 128
      %22 = vsyncadd [#allocation3], %s21
      %s24 = sshll.u32 [#allocation6], 4
      %s25 = int_to_ptr.vmem [resolvable:$true] %s24
      %27 = dma.hbm_to_vmem [thread:$0]  %s1, 128, %s25, [#allocation3]
    $region9: #{tpu_custom_call.1} parent=1 // pred_fallthru
      _
    // Predicated region
    $region10: #{tpu_custom_call.1} parent=1 // pred_check
      _
    $region11: #{tpu_custom_call.1} parent=1 // pred_check_branch
      %29 = sbr.rel (0) target = $region13
    $region12: #{tpu_custom_call.1} parent=1 // pred_region
      %30 = dma.done [#allocation5], 16
    $region13: #{tpu_custom_call.1} parent=1 // pred_fallthru
      _
    // Predicated region
    $region14: #{tpu_custom_call.1} parent=1 // pred_check
      _
    $region15: #{tpu_custom_call.1} parent=1 // pred_check_branch
      %32 = sbr.rel (0) target = $region17
    $region16: #{tpu_custom_call.1} parent=1 // pred_region
      %33 = dma.done [#allocation3], 128
    $region17: #{tpu_custom_call.1} parent=1 // pred_fallthru
      _
    %34 = sfence
    %v35 = vld [vmem:[#allocation6] sm:$0xff]
    %s36 = sld [smem:[#allocation2]]
    %s37 = sld [smem:[#allocation2 + $0x1]]
    %s38 = sld [smem:[#allocation2 + $0x2]]
    %s39 = sld [smem:[#allocation2 + $0x3]]
    %v40 = vstv %s36
    %v41 = vmul.f32 %v40, %v35
    %v42 = vstv %s37
    %v43 = vadd.f32 %v41, %v42
    %v44 = vmul.f32 %v43, %v35
    %v45 = vstv %s38
    %v46 = vadd.f32 %v44, %v45
    %v47 = vmul.f32 %v46, %v35
    %v48 = vstv %s39
    %v49 = vadd.f32 %v47, %v48
    %50 = vst [vmem:[#allocation7] sm:$0xff] %v49
    // Predicated region
    $region18: #{tpu_custom_call.1} parent=1 // pred_check
      _
    $region19: #{tpu_custom_call.1} parent=1 // pred_check_branch
      %52 = sbr.rel (0) target = $region21
    $region20: #{tpu_custom_call.1} parent=1 // pred_region
      %s54 = ssub.s32 128, 128
      %55 = vsyncadd [#allocation4], %s54
      %s57 = sshll.u32 [#allocation7], 4
      %s58 = int_to_ptr.vmem [resolvable:$true] %s57
      %60 = dma.vmem_to_hbm [thread:$0]  %s58, 128, %s2, [#allocation4]
    $region21: #{tpu_custom_call.1} parent=1 // pred_fallthru
      _
    // Predicated region
    $region22: #{tpu_custom_call.1} parent=1 // pred_check
      _
    $region23: #{tpu_custom_call.1} parent=1 // pred_check_branch
      %62 = sbr.rel (0) target = $region25
    $region24: #{tpu_custom_call.1} parent=1 // pred_region
      %63 = dma.done [#allocation4], 128
    $region25: #{tpu_custom_call.1} parent=1 // pred_fallthru
      _
    %64 = vsyncpa [#allocation3], 1
    %65 = vsyncpa [#allocation4], 1
    %66 = vsyncpa [#allocation5], 1

</llo_original>
